<compile_context>
chip_gen: v7x
topology: tpu7x:2x2x1
jax: 0.10.0
libtpu: 0.0.40
codegen_flags: <defaults>
</compile_context>

<pallas_src>
import math

import jax
import jax.numpy as jnp
from jax.experimental import pallas as pl
from jax.experimental.pallas import tpu as pltpu

EMBEDDING_DIM = 50
D_PAD = 64                      # pad D -> 64 so real|imag slab is 128 wide
NUM_ENTITIES = 3                # {'Alice','Bob','Charlie'}
NUM_RELATIONS = 2               # {'knows','likes'}


def _xavier_uniform(key, shape):
    # torch nn.init.xavier_uniform_ on a 2D weight: fan_out = shape[0], fan_in = shape[1]
    fan_out, fan_in = shape
    bound = math.sqrt(6.0 / (fan_in + fan_out))
    return jax.random.uniform(key, shape, dtype=jnp.float32, minval=-bound, maxval=bound)


def _rotate_kernel(h_ref, r_ref, t_ref, o_ref):
    # Blocks are (2*D_PAD, TILE_B): embedding dim on sublanes, batch on lanes.
    # Rows [0:D_PAD] = real part / cos, rows [D_PAD:] = imag part / sin.
    rh = h_ref[:D_PAD, :]
    ih = h_ref[D_PAD:, :]
    rr = r_ref[:D_PAD, :]       # cos(phase), precomputed in wrapper
    ir = r_ref[D_PAD:, :]       # sin(phase), precomputed in wrapper
    rt = t_ref[:D_PAD, :]
    it = t_ref[D_PAD:, :]

    real_score = rh * rr - ih * ir
    imag_score = rh * ir + ih * rr
    dr = real_score - rt
    di = imag_score - it
    dist = jnp.sqrt(dr * dr + di * di)                 # (D_PAD, TILE_B)
    o_ref[...] = jnp.sum(dist, axis=0, keepdims=True)  # (1, TILE_B) lane-dense


def _precompute_tables(entity_emb, relation_emb):
    """Build tiny lookup tables once (hoists transcendentals + de-interleave).

    Returns:
      ent_t: (2*D_PAD, NUM_ENTITIES)  rows = [real(D_PAD) | imag(D_PAD)]
      rel_t: (2*D_PAD, NUM_RELATIONS) rows = [cos(D_PAD)  | sin(D_PAD)]
    """
    D = EMBEDDING_DIM
    ne = entity_emb.shape[0]
    pad = ((0, 0), (0, D_PAD - D))

    ent = entity_emb.reshape(ne, D, 2)                 # torch .view(-1, D, 2)
    real_e = jnp.pad(ent[:, :, 0], pad)
    imag_e = jnp.pad(ent[:, :, 1], pad)
    ent_ri = jnp.concatenate([real_e, imag_e], axis=1)         # (NE, 2*D_PAD)

    phase = relation_emb / (D / math.pi)
    rel_cs = jnp.concatenate(
        [jnp.pad(jnp.cos(phase), pad), jnp.pad(jnp.sin(phase), pad)], axis=1
    )                                                          # (NR, 2*D_PAD)
    return ent_ri.T, rel_cs.T


def rotate_score(entity_emb, relation_emb, head, relation, tail, *, max_tile_b=1024):
    """entity_emb: (num_entities, 2*D); relation_emb: (num_relations, D);
    head/relation/tail: (B,) int32 index vectors. Returns (B,) float32 scores."""
    B = head.shape[0]
    ent_t, rel_t = _precompute_tables(entity_emb, relation_emb)

    # Lane-dense batch tiling: tile is a multiple of 128 (or lane-rounded B).
    tile = min(max_tile_b, pl.cdiv(B, 128) * 128)
    Bp = pl.cdiv(B, tile) * tile
    pad_b = Bp - B
    head_p = jnp.pad(head, (0, pad_b))         # pad with entity 0 (sliced off)
    rel_p = jnp.pad(relation, (0, pad_b))
    tail_p = jnp.pad(tail, (0, pad_b))

    # Contiguous slab gathers from the tiny precomputed tables (no strided
    # de-interleave copies); slabs are (2*D_PAD, Bp) = (128, Bp).
    h_slab = jnp.take(ent_t, head_p, axis=1)
    r_slab = jnp.take(rel_t, rel_p, axis=1)
    t_slab = jnp.take(ent_t, tail_p, axis=1)

    in_spec = pl.BlockSpec((2 * D_PAD, tile), lambda i: (0, i))
    out = pl.pallas_call(
        _rotate_kernel,
        out_shape=jax.ShapeDtypeStruct((1, Bp), jnp.float32),
        grid=(Bp // tile,),
        in_specs=[in_spec, in_spec, in_spec],
        out_specs=pl.BlockSpec((1, tile), lambda i: (0, i)),
        compiler_params=pltpu.CompilerParams(
            dimension_semantics=("parallel",)),
    )(h_slab, r_slab, t_slab)
    return out[0, :B]


def rotate_score_ref(entity_emb, relation_emb, head, relation, tail):
    """Pure-JAX reference (mirrors the PyTorch forward) for validation."""
    B = head.shape[0]
    D = EMBEDDING_DIM
    head_emb = jnp.take(entity_emb, head, axis=0).reshape(B, D, 2)
    tail_emb = jnp.take(entity_emb, tail, axis=0).reshape(B, D, 2)
    rel_emb = jnp.take(relation_emb, relation, axis=0)
    rh, ih = head_emb[:, :, 0], head_emb[:, :, 1]
    rt, it = tail_emb[:, :, 0], tail_emb[:, :, 1]
    phase = rel_emb / (D / math.pi)
    rr, ir = jnp.cos(phase), jnp.sin(phase)
    rs = rh * rr - ih * ir
    is_ = rh * ir + ih * rr
    return jnp.sqrt((rs - rt) ** 2 + (is_ - it) ** 2).sum(axis=1)


if __name__ == "__main__":
    key = jax.random.PRNGKey(0)
    k_ent, k_rel, k_h, k_r, k_t = jax.random.split(key, 5)

    # Deterministic parameter init (xavier_uniform, same shapes as the module).
    entity_emb = _xavier_uniform(k_ent, (NUM_ENTITIES, EMBEDDING_DIM * 2))
    relation_emb = _xavier_uniform(k_rel, (NUM_RELATIONS, EMBEDDING_DIM))

    B = 8
    head = jax.random.randint(k_h, (B,), 0, NUM_ENTITIES, dtype=jnp.int32)
    relation = jax.random.randint(k_r, (B,), 0, NUM_RELATIONS, dtype=jnp.int32)
    tail = jax.random.randint(k_t, (B,), 0, NUM_ENTITIES, dtype=jnp.int32)

    score = rotate_score(entity_emb, relation_emb, head, relation, tail)
    jax.block_until_ready(score)

    expected = rotate_score_ref(entity_emb, relation_emb, head, relation, tail)
    assert score.shape == (B,)
    assert jnp.allclose(score, expected, rtol=1e-5, atol=1e-5), (score, expected)

    print("KERNEL_OK")
</pallas_src>

<mosaic_0001>
module attributes {stable_mosaic.version = 11 : i64} {
  func.func @_rotate_kernel(%arg0: i32, %arg1: memref<128x128xf32, #tpu.memory_space<vmem>>, %arg2: memref<128x128xf32, #tpu.memory_space<vmem>>, %arg3: memref<128x128xf32, #tpu.memory_space<vmem>>, %arg4: memref<1x128xf32, #tpu.memory_space<vmem>>) attributes {dimension_semantics = [#tpu.dimension_semantics<parallel>], iteration_bounds = array<i64: 1>, scalar_prefetch = 0 : i64, scratch_operands = 0 : i64, tpu.core_type = #tpu.core_type<tc>, window_params = [{transform_indices = @transform_0, window_bounds = array<i64: 128, 128>}, {transform_indices = @transform_1, window_bounds = array<i64: 128, 128>}, {transform_indices = @transform_2, window_bounds = array<i64: 128, 128>}, {transform_indices = @transform_3, window_bounds = array<i64: 1, 128>}]} {
    %c0 = arith.constant 0 : index
    %c0_0 = arith.constant 0 : index
    %0 = vector.load %arg1[%c0, %c0_0] : memref<128x128xf32, #tpu.memory_space<vmem>>, vector<64x128xf32>
    %c64 = arith.constant 64 : index
    %c0_1 = arith.constant 0 : index
    %1 = vector.load %arg1[%c64, %c0_1] : memref<128x128xf32, #tpu.memory_space<vmem>>, vector<64x128xf32>
    %c0_2 = arith.constant 0 : index
    %c0_3 = arith.constant 0 : index
    %2 = vector.load %arg2[%c0_2, %c0_3] : memref<128x128xf32, #tpu.memory_space<vmem>>, vector<64x128xf32>
    %c64_4 = arith.constant 64 : index
    %c0_5 = arith.constant 0 : index
    %3 = vector.load %arg2[%c64_4, %c0_5] : memref<128x128xf32, #tpu.memory_space<vmem>>, vector<64x128xf32>
    %c0_6 = arith.constant 0 : index
    %c0_7 = arith.constant 0 : index
    %4 = vector.load %arg3[%c0_6, %c0_7] : memref<128x128xf32, #tpu.memory_space<vmem>>, vector<64x128xf32>
    %c64_8 = arith.constant 64 : index
    %c0_9 = arith.constant 0 : index
    %5 = vector.load %arg3[%c64_8, %c0_9] : memref<128x128xf32, #tpu.memory_space<vmem>>, vector<64x128xf32>
    %6 = arith.mulf %0, %2 : vector<64x128xf32>
    %7 = arith.mulf %1, %3 : vector<64x128xf32>
    %8 = arith.subf %6, %7 : vector<64x128xf32>
    %9 = arith.mulf %0, %3 : vector<64x128xf32>
    %10 = arith.mulf %1, %2 : vector<64x128xf32>
    %11 = arith.addf %9, %10 : vector<64x128xf32>
    %12 = arith.subf %8, %4 : vector<64x128xf32>
    %13 = arith.subf %11, %5 : vector<64x128xf32>
    %14 = arith.mulf %12, %12 : vector<64x128xf32>
    %15 = arith.mulf %13, %13 : vector<64x128xf32>
    %16 = arith.addf %14, %15 : vector<64x128xf32>
    %17 = math.sqrt %16 : vector<64x128xf32>
    %cst = arith.constant dense<0.000000e+00> : vector<128xf32>
    %18 = vector.multi_reduction <add>, %17, %cst [0] : vector<64x128xf32> to vector<128xf32>
    %19 = vector.shape_cast %18 : vector<128xf32> to vector<1x128xf32>
    %c0_10 = arith.constant 0 : index
    %c0_11 = arith.constant 0 : index
    %20 = vector.load %arg4[%c0_10, %c0_11] : memref<1x128xf32, #tpu.memory_space<vmem>>, vector<1x128xf32>
    tpu.vector_store %arg4[%c0_10, %c0_11], %19 {strides = array<i32>} : memref<1x128xf32, #tpu.memory_space<vmem>>, vector<1x128xf32>,
    return
  }
  func.func @transform_0(%arg0: i32) -> (i32, i32) {
    %c0_i32 = arith.constant 0 : i32
    %c0_i32_0 = arith.constant 0 : i32
    return %c0_i32, %arg0 : i32, i32
  }
  func.func @transform_1(%arg0: i32) -> (i32, i32) {
    %c0_i32 = arith.constant 0 : i32
    %c0_i32_0 = arith.constant 0 : i32
    return %c0_i32, %arg0 : i32, i32
  }
  func.func @transform_2(%arg0: i32) -> (i32, i32) {
    %c0_i32 = arith.constant 0 : i32
    %c0_i32_0 = arith.constant 0 : i32
    return %c0_i32, %arg0 : i32, i32
  }
  func.func @transform_3(%arg0: i32) -> (i32, i32) {
    %c0_i32 = arith.constant 0 : i32
    %c0_i32_0 = arith.constant 0 : i32
    return %c0_i32, %arg0 : i32, i32
  }
}

</mosaic_0001>

<llo_original>
// kernel: tpu_custom_call.1
$region0: #{tpu_custom_call.1}
  #allocation0 [shape = 'u32[]', space=smem, size = 0x4, offset = 0x4, fixed_abs, tag = 'smem constant byte address 0x4 - core index']
  #allocation1 [shape = 'u32[144,128]{1,0:T(1,128)}', space=vmem, size = 0x12000, scoped, tag = 'internal scratch']
  %s0 = inlined_call_operand.hbm [shape: f32[128,128], index: 0, kind: input, shape index: {}]
  %s1 = inlined_call_operand.hbm [shape: f32[128,128], index: 1, kind: input, shape index: {}]
  %s2 = inlined_call_operand.hbm [shape: f32[128,128], index: 2, kind: input, shape index: {}]
  %s3 = inlined_call_operand.hbm [shape: f32[1,128], index: 3, kind: output, shape index: {}]
  %s4 = sld [smem:[#allocation0]]
  $region34: #{tpu_custom_call.1} parent=0
    _
  %s6 = ssub.s32 1, %s4
  %s7 = scalar_select 0, %s6, %s4
  $region1: #{tpu_custom_call.1} parent=0
    #allocation2 [shape = 'u8[65536]{0}', space=vmem, size = 0x10000, scoped, tag = 'input window, operand 0, single buffered']
    #allocation3 [shape = 's32[1]{0}', space=sflag, size = 0x4, scoped, tag = 'scoped memory for tpu_custom_call.1']
    #allocation4 [shape = 's32[1]{0}', space=sflag, size = 0x4, scoped, tag = 'scoped memory for tpu_custom_call.1']
    #allocation5 [shape = 'u8[65536]{0}', space=vmem, size = 0x10000, scoped, tag = 'input window, operand 1, single buffered']
    #allocation6 [shape = 's32[1]{0}', space=sflag, size = 0x4, scoped, tag = 'scoped memory for tpu_custom_call.1']
    #allocation7 [shape = 'u8[65536]{0}', space=vmem, size = 0x10000, scoped, tag = 'input window, operand 2, single buffered']
    #allocation8 [shape = 'u8[512]{0}', space=vmem, size = 0x400, scoped, tag = 'output window, operand 0, single buffered']
    %8 = vsyncpa [#allocation3], 0
    %9 = vsyncpa [#allocation6], 0
    %10 = vsyncpa [#allocation4], 0
    // Predicated region
    $region2: #{tpu_custom_call.1} parent=1 // pred_check
      _
    $region3: #{tpu_custom_call.1} parent=1 // pred_check_branch
      %12 = sbr.rel (0) target = $region5
    $region4: #{tpu_custom_call.1} parent=1 // pred_region
      %s14 = ssub.s32 2048, 2048
      %15 = vsyncadd [#allocation3], %s14
      %s16 = sshll.u32 [#allocation2], 4
      %s17 = int_to_ptr.vmem [resolvable:$true] %s16
      %22 = dma.hbm_to_vmem [thread:$0]  %s0, 2048, %s17, [#allocation3], 128, 128, 8
    $region5: #{tpu_custom_call.1} parent=1 // pred_fallthru
      _
    // Predicated region
    $region6: #{tpu_custom_call.1} parent=1 // pred_check
      _
    $region7: #{tpu_custom_call.1} parent=1 // pred_check_branch
      %24 = sbr.rel (0) target = $region9
    $region8: #{tpu_custom_call.1} parent=1 // pred_region
      %s26 = ssub.s32 2048, 2048
      %27 = vsyncadd [#allocation6], %s26
      %s28 = sshll.u32 [#allocation5], 4
      %s29 = int_to_ptr.vmem [resolvable:$true] %s28
      %34 = dma.hbm_to_vmem [thread:$0]  %s1, 2048, %s29, [#allocation6], 128, 128, 8
    $region9: #{tpu_custom_call.1} parent=1 // pred_fallthru
      _
    // Predicated region
    $region10: #{tpu_custom_call.1} parent=1 // pred_check
      _
    $region11: #{tpu_custom_call.1} parent=1 // pred_check_branch
      %36 = sbr.rel (0) target = $region13
    $region12: #{tpu_custom_call.1} parent=1 // pred_region
      %s38 = ssub.s32 2048, 2048
      %39 = vsyncadd [#allocation6], %s38
      %s40 = sshll.u32 [#allocation7], 4
      %s41 = int_to_ptr.vmem [resolvable:$true] %s40
      %46 = dma.hbm_to_vmem [thread:$0]  %s2, 2048, %s41, [#allocation6], 128, 128, 8
    $region13: #{tpu_custom_call.1} parent=1 // pred_fallthru
      _
    // Predicated region
    $region14: #{tpu_custom_call.1} parent=1 // pred_check
      _
    $region15: #{tpu_custom_call.1} parent=1 // pred_check_branch
      %48 = sbr.rel (0) target = $region17
    $region16: #{tpu_custom_call.1} parent=1 // pred_region
      %49 = dma.done [#allocation3], 2048
    $region17: #{tpu_custom_call.1} parent=1 // pred_fallthru
      _
    // Predicated region
    $region18: #{tpu_custom_call.1} parent=1 // pred_check
      _
    $region19: #{tpu_custom_call.1} parent=1 // pred_check_branch
      %51 = sbr.rel (0) target = $region21
    $region20: #{tpu_custom_call.1} parent=1 // pred_region
      %52 = dma.done [#allocation6], 2048
    $region21: #{tpu_custom_call.1} parent=1 // pred_fallthru
      _
    // Predicated region
    $region22: #{tpu_custom_call.1} parent=1 // pred_check
      _
    $region23: #{tpu_custom_call.1} parent=1 // pred_check_branch
      %54 = sbr.rel (0) target = $region25
    $region24: #{tpu_custom_call.1} parent=1 // pred_region
      %55 = dma.done [#allocation6], 2048
    $region25: #{tpu_custom_call.1} parent=1 // pred_fallthru
      _
    %v56 = vld [vmem:[#allocation2] sm:$0xff]
    %v57 = vld [vmem:[#allocation2 + $0x8] sm:$0xff]
    %v58 = vld [vmem:[#allocation2 + $0x10] sm:$0xff]
    %v59 = vld [vmem:[#allocation2 + $0x18] sm:$0xff]
    %v60 = vld [vmem:[#allocation2 + $0x20] sm:$0xff]
    %v61 = vld [vmem:[#allocation2 + $0x28] sm:$0xff]
    %v62 = vld [vmem:[#allocation2 + $0x30] sm:$0xff]
    %v63 = vld [vmem:[#allocation2 + $0x38] sm:$0xff]
    %v64 = vld [vmem:[#allocation2 + $0x40] sm:$0xff]
    %v65 = vld [vmem:[#allocation2 + $0x48] sm:$0xff]
    %v66 = vld [vmem:[#allocation2 + $0x50] sm:$0xff]
    %v67 = vld [vmem:[#allocation2 + $0x58] sm:$0xff]
    %v68 = vld [vmem:[#allocation2 + $0x60] sm:$0xff]
    %v69 = vld [vmem:[#allocation2 + $0x68] sm:$0xff]
    %v70 = vld [vmem:[#allocation2 + $0x70] sm:$0xff]
    %v71 = vld [vmem:[#allocation2 + $0x78] sm:$0xff]
    %v72 = vld [vmem:[#allocation5] sm:$0xff]
    %v73 = vld [vmem:[#allocation5 + $0x8] sm:$0xff]
    %v74 = vld [vmem:[#allocation5 + $0x10] sm:$0xff]
    %v75 = vld [vmem:[#allocation5 + $0x18] sm:$0xff]
    %v76 = vld [vmem:[#allocation5 + $0x20] sm:$0xff]
    %v77 = vld [vmem:[#allocation5 + $0x28] sm:$0xff]
    %v78 = vld [vmem:[#allocation5 + $0x30] sm:$0xff]
    %v79 = vld [vmem:[#allocation5 + $0x38] sm:$0xff]
    %v80 = vld [vmem:[#allocation5 + $0x40] sm:$0xff]
    %v81 = vld [vmem:[#allocation5 + $0x48] sm:$0xff]
    %v82 = vld [vmem:[#allocation5 + $0x50] sm:$0xff]
    %v83 = vld [vmem:[#allocation5 + $0x58] sm:$0xff]
    %v84 = vld [vmem:[#allocation5 + $0x60] sm:$0xff]
    %v85 = vld [vmem:[#allocation5 + $0x68] sm:$0xff]
    %v86 = vld [vmem:[#allocation5 + $0x70] sm:$0xff]
    %v87 = vld [vmem:[#allocation5 + $0x78] sm:$0xff]
    %v88 = vld [vmem:[#allocation7] sm:$0xff]
    %v89 = vld [vmem:[#allocation7 + $0x8] sm:$0xff]
    %v90 = vld [vmem:[#allocation7 + $0x10] sm:$0xff]
    %v91 = vld [vmem:[#allocation7 + $0x18] sm:$0xff]
    %v92 = vld [vmem:[#allocation7 + $0x20] sm:$0xff]
    %v93 = vld [vmem:[#allocation7 + $0x28] sm:$0xff]
    %v94 = vld [vmem:[#allocation7 + $0x30] sm:$0xff]
    %v95 = vld [vmem:[#allocation7 + $0x38] sm:$0xff]
    %v96 = vld [vmem:[#allocation7 + $0x40] sm:$0xff]
    %v97 = vld [vmem:[#allocation7 + $0x48] sm:$0xff]
    %v98 = vld [vmem:[#allocation7 + $0x50] sm:$0xff]
    %v99 = vld [vmem:[#allocation7 + $0x58] sm:$0xff]
    %v100 = vld [vmem:[#allocation7 + $0x60] sm:$0xff]
    %v101 = vld [vmem:[#allocation7 + $0x68] sm:$0xff]
    %v102 = vld [vmem:[#allocation7 + $0x70] sm:$0xff]
    %v103 = vld [vmem:[#allocation7 + $0x78] sm:$0xff]
    %v104 = vmul.f32 %v56, %v72
    %v105 = vmul.f32 %v57, %v73
    %v106 = vmul.f32 %v58, %v74
    %v107 = vmul.f32 %v59, %v75
    %v108 = vmul.f32 %v60, %v76
    %v109 = vmul.f32 %v61, %v77
    %v110 = vmul.f32 %v62, %v78
    %v111 = vmul.f32 %v63, %v79
    %v112 = vmul.f32 %v64, %v80
    %v113 = vmul.f32 %v65, %v81
    %v114 = vmul.f32 %v66, %v82
    %v115 = vmul.f32 %v67, %v83
    %v116 = vmul.f32 %v68, %v84
    %v117 = vmul.f32 %v69, %v85
    %v118 = vmul.f32 %v70, %v86
    %v119 = vmul.f32 %v71, %v87
    %v120 = vsub.f32 %v104, %v112
    %v121 = vsub.f32 %v105, %v113
    %v122 = vsub.f32 %v106, %v114
    %v123 = vsub.f32 %v107, %v115
    %v124 = vsub.f32 %v108, %v116
    %v125 = vsub.f32 %v109, %v117
    %v126 = vsub.f32 %v110, %v118
    %v127 = vsub.f32 %v111, %v119
    %v128 = vmul.f32 %v56, %v80
    %v129 = vmul.f32 %v57, %v81
    %v130 = vmul.f32 %v58, %v82
    %v131 = vmul.f32 %v59, %v83
    %v132 = vmul.f32 %v60, %v84
    %v133 = vmul.f32 %v61, %v85
    %v134 = vmul.f32 %v62, %v86
    %v135 = vmul.f32 %v63, %v87
    %v136 = vmul.f32 %v64, %v72
    %v137 = vmul.f32 %v65, %v73
    %v138 = vmul.f32 %v66, %v74
    %v139 = vmul.f32 %v67, %v75
    %v140 = vmul.f32 %v68, %v76
    %v141 = vmul.f32 %v69, %v77
    %v142 = vmul.f32 %v70, %v78
    %v143 = vmul.f32 %v71, %v79
    %v144 = vadd.f32 %v128, %v136
    %v145 = vadd.f32 %v129, %v137
    %v146 = vadd.f32 %v130, %v138
    %v147 = vadd.f32 %v131, %v139
    %v148 = vadd.f32 %v132, %v140
    %v149 = vadd.f32 %v133, %v141
    %v150 = vadd.f32 %v134, %v142
    %v151 = vadd.f32 %v135, %v143
    %v152 = vsub.f32 %v120, %v88
    %v153 = vsub.f32 %v121, %v89
    %v154 = vsub.f32 %v122, %v90
    %v155 = vsub.f32 %v123, %v91
    %v156 = vsub.f32 %v124, %v92
    %v157 = vsub.f32 %v125, %v93
    %v158 = vsub.f32 %v126, %v94
    %v159 = vsub.f32 %v127, %v95
    %v160 = vsub.f32 %v144, %v96
    %v161 = vsub.f32 %v145, %v97
    %v162 = vsub.f32 %v146, %v98
    %v163 = vsub.f32 %v147, %v99
    %v164 = vsub.f32 %v148, %v100
    %v165 = vsub.f32 %v149, %v101
    %v166 = vsub.f32 %v150, %v102
    %v167 = vsub.f32 %v151, %v103
    %v168 = vmul.f32 %v152, %v152
    %v169 = vmul.f32 %v153, %v153
    %v170 = vmul.f32 %v154, %v154
    %v171 = vmul.f32 %v155, %v155
    %v172 = vmul.f32 %v156, %v156
    %v173 = vmul.f32 %v157, %v157
    %v174 = vmul.f32 %v158, %v158
    %v175 = vmul.f32 %v159, %v159
    %v176 = vmul.f32 %v160, %v160
    %v177 = vmul.f32 %v161, %v161
    %v178 = vmul.f32 %v162, %v162
    %v179 = vmul.f32 %v163, %v163
    %v180 = vmul.f32 %v164, %v164
    %v181 = vmul.f32 %v165, %v165
    %v182 = vmul.f32 %v166, %v166
    %v183 = vmul.f32 %v167, %v167
    %v184 = vadd.f32 %v168, %v176
    %v185 = vadd.f32 %v169, %v177
    %v186 = vadd.f32 %v170, %v178
    %v187 = vadd.f32 %v171, %v179
    %v188 = vadd.f32 %v172, %v180
    %v189 = vadd.f32 %v173, %v181
    %v190 = vadd.f32 %v174, %v182
    %v191 = vadd.f32 %v175, %v183
    %v192 = vrsqrt.pop %v184
    %v193 = vmul.f32 %v184, %v192
    %vm194 = vcmp.eq.f32.partialorder %v184, inf
    %v195 = vsel %vm194, %v184, %v193
    %vm196 = vcmp.eq.f32.partialorder %v184, 0.0
    %v197 = vand.u32 %v184, 2147483648
    %v198 = vsel %vm196, %v197, %v195
    %v199 = vrsqrt.pop %v185
    %v200 = vmul.f32 %v185, %v199
    %vm201 = vcmp.eq.f32.partialorder %v185, inf
    %v202 = vsel %vm201, %v185, %v200
    %vm203 = vcmp.eq.f32.partialorder %v185, 0.0
    %v204 = vand.u32 %v185, 2147483648
    %v205 = vsel %vm203, %v204, %v202
    %v206 = vrsqrt.pop %v186
    %v207 = vmul.f32 %v186, %v206
    %vm208 = vcmp.eq.f32.partialorder %v186, inf
    %v209 = vsel %vm208, %v186, %v207
    %vm210 = vcmp.eq.f32.partialorder %v186, 0.0
    %v211 = vand.u32 %v186, 2147483648
    %v212 = vsel %vm210, %v211, %v209
    %v213 = vrsqrt.pop %v187
    %v214 = vmul.f32 %v187, %v213
    %vm215 = vcmp.eq.f32.partialorder %v187, inf
    %v216 = vsel %vm215, %v187, %v214
    %vm217 = vcmp.eq.f32.partialorder %v187, 0.0
    %v218 = vand.u32 %v187, 2147483648
    %v219 = vsel %vm217, %v218, %v216
    %v220 = vrsqrt.pop %v188
    %v221 = vmul.f32 %v188, %v220
    %vm222 = vcmp.eq.f32.partialorder %v188, inf
    %v223 = vsel %vm222, %v188, %v221
    %vm224 = vcmp.eq.f32.partialorder %v188, 0.0
    %v225 = vand.u32 %v188, 2147483648
    %v226 = vsel %vm224, %v225, %v223
    %v227 = vrsqrt.pop %v189
    %v228 = vmul.f32 %v189, %v227
    %vm229 = vcmp.eq.f32.partialorder %v189, inf
    %v230 = vsel %vm229, %v189, %v228
    %vm231 = vcmp.eq.f32.partialorder %v189, 0.0
    %v232 = vand.u32 %v189, 2147483648
    %v233 = vsel %vm231, %v232, %v230
    %v234 = vrsqrt.pop %v190
    %v235 = vmul.f32 %v190, %v234
    %vm236 = vcmp.eq.f32.partialorder %v190, inf
    %v237 = vsel %vm236, %v190, %v235
    %vm238 = vcmp.eq.f32.partialorder %v190, 0.0
    %v239 = vand.u32 %v190, 2147483648
    %v240 = vsel %vm238, %v239, %v237
    %v241 = vrsqrt.pop %v191
    %v242 = vmul.f32 %v191, %v241
    %vm243 = vcmp.eq.f32.partialorder %v191, inf
    %v244 = vsel %vm243, %v191, %v242
    %vm245 = vcmp.eq.f32.partialorder %v191, 0.0
    %v246 = vand.u32 %v191, 2147483648
    %v247 = vsel %vm245, %v246, %v244
    %v248 = vadd.f32 %v198, %v205
    %v249 = vadd.f32 %v248, %v212
    %v250 = vadd.f32 %v249, %v219
    %v251 = vadd.f32 %v250, %v226
    %v252 = vadd.f32 %v251, %v233
    %v253 = vadd.f32 %v252, %v240
    %v254 = vadd.f32 %v253, %v247
    %v255 = vrot.slane %v254, 4
    %v256 = vadd.f32 %v254, %v255
    %v257 = vrot.slane %v256, 2
    %v258 = vadd.f32 %v256, %v257
    %v259 = vrot.slane %v258, 1
    %v260 = vadd.f32 %v258, %v259
    %261 = vst [vmem:[#allocation8] sm:$0x1] %v260
    // Predicated region
    $region26: #{tpu_custom_call.1} parent=1 // pred_check
      _
    $region27: #{tpu_custom_call.1} parent=1 // pred_check_branch
      %263 = sbr.rel (0) target = $region29
    $region28: #{tpu_custom_call.1} parent=1 // pred_region
      %s265 = ssub.s32 16, 16
      %266 = vsyncadd [#allocation4], %s265
      %s268 = sshll.u32 [#allocation8], 4
      %s269 = int_to_ptr.vmem [resolvable:$true] %s268
      %271 = dma.vmem_to_hbm [thread:$0]  %s269, 16, %s3, [#allocation4]
    $region29: #{tpu_custom_call.1} parent=1 // pred_fallthru
      _
    // Predicated region
    $region30: #{tpu_custom_call.1} parent=1 // pred_check
      _
    $region31: #{tpu_custom_call.1} parent=1 // pred_check_branch
      %273 = sbr.rel (0) target = $region33
    $region32: #{tpu_custom_call.1} parent=1 // pred_region
      %274 = dma.done [#allocation4], 16
    $region33: #{tpu_custom_call.1} parent=1 // pred_fallthru
      _
    %275 = vsyncpa [#allocation3], 1
    %276 = vsyncpa [#allocation6], 1
    %277 = vsyncpa [#allocation4], 1

</llo_original>
